<compile_context>
chip_gen: v7x
topology: tpu7x:2x2x1
jax: 0.10.0
libtpu: 0.0.40
codegen_flags: <defaults>
</compile_context>

<pallas_src>
import math
import functools

import jax
import jax.numpy as jnp
from jax.experimental import pallas as pl
from jax.experimental.pallas import tpu as pltpu

EPS = 1e-4                   # self.eps = 0.0001 (the later assignment in __init__ wins)
TWO_PI_ISH = 2.0 * 3.14159   # module hard-codes 3.14159, not math.pi
LOG2_E = 1.0 / math.log(2.0)


def _gsm_kernel(x_ref, u_ref, pil_ref, nhiv_ref, round_ref, psum_ref, *,
                s, n_lane_blocks, rows, cols, br, bc, needs_mask, use_bf16_exp):
    """One (BR, BC) tile of the GSM forward.

    x_ref, u_ref   : (BR, BC)  features and uniform noise
    pil_ref        : (BR, s)   softmax(pi) * leading_term        (per row = per channel)
    nhiv_ref       : (BR, s)   -0.5 * exp(-var) * log2(e)        (per row = per channel)
    round_ref      : (BR, BC)  round(x)
    psum_ref       : (BR, 128) lane-dense partial sums of log2(total_pdf),
                               resident across the column grid axis.
    """
    r = pl.program_id(0)
    c = pl.program_id(1)

    x = x_ref[...]
    u = u_ref[...]

    # Quantized output (torch.round == round-half-to-even == jnp.round).
    round_ref[...] = jnp.round(x)

    z = x + u
    z2 = z * z

    total = jnp.full_like(z, EPS)
    # s is small (6) -> static unrolled loop; each component is one VPU fma + one EUP exp2.
    for s_idx in range(s):
        coef = pil_ref[:, s_idx:s_idx + 1]     # (BR, 1), broadcasts over lanes
        nhiv = nhiv_ref[:, s_idx:s_idx + 1]    # (BR, 1), already scaled by log2(e)
        arg = nhiv * z2
        if use_bf16_exp:
            # bf16 EUP path (v6e/v7x); accumulate in f32.
            e = jnp.exp2(arg.astype(jnp.bfloat16)).astype(jnp.float32)
        else:
            e = jnp.exp2(arg)
        total = total + coef * e

    log2_pdf = jnp.log2(total)

    if needs_mask:
        # Zero padded rows/cols so they don't contribute log2(eps) to the loss.
        row_ids = jax.lax.broadcasted_iota(jnp.int32, (br, bc), 0) + r * br
        col_ids = jax.lax.broadcasted_iota(jnp.int32, (br, bc), 1) + c * bc
        valid = (row_ids < rows) & (col_ids < cols)
        log2_pdf = jnp.where(valid, log2_pdf, 0.0)

    # Fold the BC lanes down to 128 by adding aligned 128-lane slabs (pure vadds,
    # no cross-lane movement).  The remaining reduction happens in plain JAX.
    folded = log2_pdf[:, 0:128]
    for lb in range(1, n_lane_blocks):
        folded = folded + log2_pdf[:, lb * 128:(lb + 1) * 128]

    @pl.when(c == 0)
    def _():
        psum_ref[...] = jnp.zeros_like(psum_ref)

    psum_ref[...] += folded


def _round_up(a, b):
    return ((a + b - 1) // b) * b


def gsm_forward(x, u, pi_param, var_param, feat_weight=1.0, use_bf16_exp=False):
    """GSM training forward for one feature map.

    x         : (B, K, H, W) float32
    u         : (B, K, H, W) float32, uniform(-0.5, 0.5) noise
    pi_param  : (1, K, 1, 1, S) float32
    var_param : (1, K, 1, 1, S) float32
    Returns (round(x), scalar loss).
    """
    B, K, H, W = x.shape
    S = pi_param.shape[-1]

    # ---- parameter prep (glue, plain JAX) ----
    pi_sm = jax.nn.softmax(pi_param, axis=-1).reshape(K, S)
    leading = 1.0 / jnp.sqrt(TWO_PI_ISH * jnp.exp(EPS + var_param)).reshape(K, S)
    pi_lead = (pi_sm * leading).astype(jnp.float32)                              # (K, S)
    # Fold log2(e) in so the kernel can use the native exp2 path.
    nhiv_l2e = (-0.5 * jnp.exp(-var_param) * LOG2_E).reshape(K, S).astype(jnp.float32)

    R = B * K
    C = H * W

    # ---- tile selection ----
    # Lanes: pad C to a multiple of 128, take the largest of {512,256,128} that divides.
    C_pad = _round_up(C, 128)
    if C_pad % 512 == 0:
        BC = 512
    elif C_pad % 256 == 0:
        BC = 256
    else:
        BC = 128
    # Rows: take them whole when small, otherwise bounded 256-row tiles.
    # Max tile = 512x512xf32 = 1 MiB; x/u/round double-buffered ~6.5 MiB -> fits
    # every generation's default scoped VMEM (16/32 MiB), incl. v7x's 64 MiB chip.
    R8 = _round_up(R, 8)
    BR = R8 if R8 <= 512 else 256
    R_pad = _round_up(R, BR)

    x2d = x.reshape(R, C)
    u2d = u.reshape(R, C)
    # Broadcast per-channel params to per-row (row = b*K + k); (R, S) is tiny.
    pi_rows = jnp.tile(pi_lead, (B, 1))
    nhiv_rows = jnp.tile(nhiv_l2e, (B, 1))

    needs_mask = (R_pad != R) or (C_pad != C)
    if needs_mask:
        x2d = jnp.pad(x2d, ((0, R_pad - R), (0, C_pad - C)))
        u2d = jnp.pad(u2d, ((0, R_pad - R), (0, C_pad - C)))
        pi_rows = jnp.pad(pi_rows, ((0, R_pad - R), (0, 0)))
        nhiv_rows = jnp.pad(nhiv_rows, ((0, R_pad - R), (0, 0)))

    grid = (R_pad // BR, C_pad // BC)

    kernel = functools.partial(
        _gsm_kernel, s=S, n_lane_blocks=BC // 128, rows=R, cols=C,
        br=BR, bc=BC, needs_mask=needs_mask, use_bf16_exp=use_bf16_exp)

    # TODO(synk): on v5e the uniform noise could be generated in-kernel with
    # pltpu.prng_seed/prng_random_bits to halve input HBM traffic (changes the
    # RNG stream, so it is kept as an explicit input here).
    rounded2d, psums = pl.pallas_call(
        kernel,
        out_shape=(
            jax.ShapeDtypeStruct((R_pad, C_pad), x.dtype),
            jax.ShapeDtypeStruct((R_pad, 128), jnp.float32),
        ),
        grid_spec=pltpu.PrefetchScalarGridSpec(
            num_scalar_prefetch=0,
            grid=grid,
            in_specs=[
                pl.BlockSpec((BR, BC), lambda r, c: (r, c)),   # x
                pl.BlockSpec((BR, BC), lambda r, c: (r, c)),   # u
                pl.BlockSpec((BR, S), lambda r, c: (r, 0)),    # pi * leading
                pl.BlockSpec((BR, S), lambda r, c: (r, 0)),    # -0.5*exp(-var)*log2(e)
            ],
            out_specs=[
                pl.BlockSpec((BR, BC), lambda r, c: (r, c)),   # round(x)
                pl.BlockSpec((BR, 128), lambda r, c: (r, 0)),  # resident lane-dense partials
            ],
        ),
        compiler_params=pltpu.CompilerParams(
            # Row axis independent -> parallel (dual-TC on v7x); column axis is
            # the reduction into the resident partial-sum block -> arbitrary.
            dimension_semantics=("parallel", "arbitrary"),
        ),
    )(x2d, u2d, pi_rows, nhiv_rows)

    loss = feat_weight * (-1.0) * (jnp.sum(psums) / (B * K * H * W))
    rounded = rounded2d[:R, :C].reshape(B, K, H, W)
    return rounded, loss


def gsm_reference(x, u, pi_param, var_param, feat_weight=1.0):
    """Pure-JAX reference matching the PyTorch forward exactly."""
    pi = jax.nn.softmax(pi_param, axis=-1)                      # (1,K,1,1,S)
    y = x[..., None]                                            # (B,K,H,W,1)
    z = y + u[..., None]                                        # same u across S components
    exp_terms = jnp.exp(-0.5 * z**2 / jnp.exp(var_param))
    leading = 1.0 / jnp.sqrt(TWO_PI_ISH * jnp.exp(EPS + var_param))
    total = jnp.sum(pi * leading * exp_terms, axis=-1) + EPS
    loss = feat_weight * (-1.0) * jnp.mean(jnp.log2(total))
    return jnp.round(x), loss


if __name__ == "__main__":
    # Small synthetic config: one feature map "p2", feat_weight=1.0, s=6 mixture comps.
    B, K, H, W, S = 2, 4, 16, 16, 6
    feat_weight = 1.0

    key = jax.random.PRNGKey(0)
    kx, ku, kpi, kvar = jax.random.split(key, 4)

    x = jax.random.normal(kx, (B, K, H, W), dtype=jnp.float32) * 2.0
    # Uniform(-0.5, 0.5) noise (uni.rsample in the module); generated as glue.
    u = jax.random.uniform(ku, (B, K, H, W), minval=-0.5, maxval=0.5, dtype=jnp.float32)
    # Deterministic "randn" parameter init, as in __init__.
    pi_param = jax.random.normal(kpi, (1, K, 1, 1, S), dtype=jnp.float32)
    var_param = jax.random.normal(kvar, (1, K, 1, 1, S), dtype=jnp.float32)

    rounded, loss = gsm_forward(x, u, pi_param, var_param, feat_weight,
                                use_bf16_exp=False)
    rounded = jax.block_until_ready(rounded)
    loss = jax.block_until_ready(loss)

    rounded_ref, loss_ref = gsm_reference(x, u, pi_param, var_param, feat_weight)
    assert jnp.array_equal(rounded, rounded_ref), "rounded output mismatch"
    assert jnp.allclose(loss, loss_ref, rtol=2e-4, atol=1e-4), (loss, loss_ref)

    print("KERNEL_OK")
</pallas_src>

<mosaic_0001>
module attributes {stable_mosaic.version = 11 : i64} {
  func.func @_gsm_kernel(%arg0: i32, %arg1: i32, %arg2: memref<8x256xf32, #tpu.memory_space<vmem>>, %arg3: memref<8x256xf32, #tpu.memory_space<vmem>>, %arg4: memref<8x6xf32, #tpu.memory_space<vmem>>, %arg5: memref<8x6xf32, #tpu.memory_space<vmem>>, %arg6: memref<8x256xf32, #tpu.memory_space<vmem>>, %arg7: memref<8x128xf32, #tpu.memory_space<vmem>>) attributes {dimension_semantics = [#tpu.dimension_semantics<parallel>, #tpu.dimension_semantics<arbitrary>], iteration_bounds = array<i64: 1, 1>, scalar_prefetch = 0 : i64, scratch_operands = 0 : i64, tpu.core_type = #tpu.core_type<tc>, window_params = [{transform_indices = @transform_0, window_bounds = array<i64: 8, 256>}, {transform_indices = @transform_1, window_bounds = array<i64: 8, 256>}, {transform_indices = @transform_2, window_bounds = array<i64: 8, 6>}, {transform_indices = @transform_3, window_bounds = array<i64: 8, 6>}, {transform_indices = @transform_4, window_bounds = array<i64: 8, 256>}, {transform_indices = @transform_5, window_bounds = array<i64: 8, 128>}]} {
    %c0 = arith.constant 0 : index
    %c0_0 = arith.constant 0 : index
    %0 = vector.load %arg2[%c0, %c0_0] : memref<8x256xf32, #tpu.memory_space<vmem>>, vector<8x256xf32>
    %c0_1 = arith.constant 0 : index
    %c0_2 = arith.constant 0 : index
    %1 = vector.load %arg3[%c0_1, %c0_2] : memref<8x256xf32, #tpu.memory_space<vmem>>, vector<8x256xf32>
    %2 = math.roundeven %0 : vector<8x256xf32>
    %c0_3 = arith.constant 0 : index
    %c0_4 = arith.constant 0 : index
    %3 = vector.load %arg6[%c0_3, %c0_4] : memref<8x256xf32, #tpu.memory_space<vmem>>, vector<8x256xf32>
    tpu.vector_store %arg6[%c0_3, %c0_4], %2 {strides = array<i32>} : memref<8x256xf32, #tpu.memory_space<vmem>>, vector<8x256xf32>,
    %4 = arith.addf %0, %1 : vector<8x256xf32>
    %5 = arith.mulf %4, %4 : vector<8x256xf32>
    %cst = arith.constant 9.99999974E-5 : f32
    %6 = vector.broadcast %cst : f32 to vector<8x256xf32>
    %c0_5 = arith.constant 0 : index
    %c0_6 = arith.constant 0 : index
    %7 = vector.load %arg4[%c0_5, %c0_6] : memref<8x6xf32, #tpu.memory_space<vmem>>, vector<8x1xf32>
    %c0_7 = arith.constant 0 : index
    %c0_8 = arith.constant 0 : index
    %8 = vector.load %arg5[%c0_7, %c0_8] : memref<8x6xf32, #tpu.memory_space<vmem>>, vector<8x1xf32>
    %9 = vector.broadcast %8 : vector<8x1xf32> to vector<8x256xf32>
    %10 = arith.mulf %9, %5 : vector<8x256xf32>
    %11 = math.exp2 %10 : vector<8x256xf32>
    %12 = vector.broadcast %7 : vector<8x1xf32> to vector<8x256xf32>
    %13 = arith.mulf %12, %11 : vector<8x256xf32>
    %14 = arith.addf %6, %13 : vector<8x256xf32>
    %c0_9 = arith.constant 0 : index
    %c1 = arith.constant 1 : index
    %15 = vector.load %arg4[%c0_9, %c1] : memref<8x6xf32, #tpu.memory_space<vmem>>, vector<8x1xf32>
    %c0_10 = arith.constant 0 : index
    %c1_11 = arith.constant 1 : index
    %16 = vector.load %arg5[%c0_10, %c1_11] : memref<8x6xf32, #tpu.memory_space<vmem>>, vector<8x1xf32>
    %17 = vector.broadcast %16 : vector<8x1xf32> to vector<8x256xf32>
    %18 = arith.mulf %17, %5 : vector<8x256xf32>
    %19 = math.exp2 %18 : vector<8x256xf32>
    %20 = vector.broadcast %15 : vector<8x1xf32> to vector<8x256xf32>
    %21 = arith.mulf %20, %19 : vector<8x256xf32>
    %22 = arith.addf %14, %21 : vector<8x256xf32>
    %c0_12 = arith.constant 0 : index
    %c2 = arith.constant 2 : index
    %23 = vector.load %arg4[%c0_12, %c2] : memref<8x6xf32, #tpu.memory_space<vmem>>, vector<8x1xf32>
    %c0_13 = arith.constant 0 : index
    %c2_14 = arith.constant 2 : index
    %24 = vector.load %arg5[%c0_13, %c2_14] : memref<8x6xf32, #tpu.memory_space<vmem>>, vector<8x1xf32>
    %25 = vector.broadcast %24 : vector<8x1xf32> to vector<8x256xf32>
    %26 = arith.mulf %25, %5 : vector<8x256xf32>
    %27 = math.exp2 %26 : vector<8x256xf32>
    %28 = vector.broadcast %23 : vector<8x1xf32> to vector<8x256xf32>
    %29 = arith.mulf %28, %27 : vector<8x256xf32>
    %30 = arith.addf %22, %29 : vector<8x256xf32>
    %c0_15 = arith.constant 0 : index
    %c3 = arith.constant 3 : index
    %31 = vector.load %arg4[%c0_15, %c3] : memref<8x6xf32, #tpu.memory_space<vmem>>, vector<8x1xf32>
    %c0_16 = arith.constant 0 : index
    %c3_17 = arith.constant 3 : index
    %32 = vector.load %arg5[%c0_16, %c3_17] : memref<8x6xf32, #tpu.memory_space<vmem>>, vector<8x1xf32>
    %33 = vector.broadcast %32 : vector<8x1xf32> to vector<8x256xf32>
    %34 = arith.mulf %33, %5 : vector<8x256xf32>
    %35 = math.exp2 %34 : vector<8x256xf32>
    %36 = vector.broadcast %31 : vector<8x1xf32> to vector<8x256xf32>
    %37 = arith.mulf %36, %35 : vector<8x256xf32>
    %38 = arith.addf %30, %37 : vector<8x256xf32>
    %c0_18 = arith.constant 0 : index
    %c4 = arith.constant 4 : index
    %39 = vector.load %arg4[%c0_18, %c4] : memref<8x6xf32, #tpu.memory_space<vmem>>, vector<8x1xf32>
    %c0_19 = arith.constant 0 : index
    %c4_20 = arith.constant 4 : index
    %40 = vector.load %arg5[%c0_19, %c4_20] : memref<8x6xf32, #tpu.memory_space<vmem>>, vector<8x1xf32>
    %41 = vector.broadcast %40 : vector<8x1xf32> to vector<8x256xf32>
    %42 = arith.mulf %41, %5 : vector<8x256xf32>
    %43 = math.exp2 %42 : vector<8x256xf32>
    %44 = vector.broadcast %39 : vector<8x1xf32> to vector<8x256xf32>
    %45 = arith.mulf %44, %43 : vector<8x256xf32>
    %46 = arith.addf %38, %45 : vector<8x256xf32>
    %c0_21 = arith.constant 0 : index
    %c5 = arith.constant 5 : index
    %47 = vector.load %arg4[%c0_21, %c5] : memref<8x6xf32, #tpu.memory_space<vmem>>, vector<8x1xf32>
    %c0_22 = arith.constant 0 : index
    %c5_23 = arith.constant 5 : index
    %48 = vector.load %arg5[%c0_22, %c5_23] : memref<8x6xf32, #tpu.memory_space<vmem>>, vector<8x1xf32>
    %49 = vector.broadcast %48 : vector<8x1xf32> to vector<8x256xf32>
    %50 = arith.mulf %49, %5 : vector<8x256xf32>
    %51 = math.exp2 %50 : vector<8x256xf32>
    %52 = vector.broadcast %47 : vector<8x1xf32> to vector<8x256xf32>
    %53 = arith.mulf %52, %51 : vector<8x256xf32>
    %54 = arith.addf %46, %53 : vector<8x256xf32>
    %55 = math.log %54 : vector<8x256xf32>
    %cst_24 = arith.constant 2.000000e+00 : f32
    %56 = math.log %cst_24 : f32
    %57 = vector.broadcast %56 : f32 to vector<8x256xf32>
    %58 = arith.divf %55, %57 : vector<8x256xf32>
    %59 = vector.extract_strided_slice %58 {offsets = [0, 0], sizes = [8, 128], strides = [1, 1]} : vector<8x256xf32> to vector<8x128xf32>
    %60 = vector.extract_strided_slice %58 {offsets = [0, 128], sizes = [8, 128], strides = [1, 1]} : vector<8x256xf32> to vector<8x128xf32>
    %61 = arith.addf %59, %60 : vector<8x128xf32>
    %c0_i32 = arith.constant 0 : i32
    %62 = arith.cmpi eq, %arg1, %c0_i32 : i32
    %63 = arith.extui %62 : i1 to i32
    %c0_i32_25 = arith.constant 0 : i32
    %64 = arith.cmpi ne, %63, %c0_i32_25 : i32
    scf.if %64 {
      %cst_30 = arith.constant 0.000000e+00 : f32
      %68 = vector.broadcast %cst_30 : f32 to vector<8x128xf32>
      %c0_31 = arith.constant 0 : index
      %c0_32 = arith.constant 0 : index
      %69 = vector.load %arg7[%c0_31, %c0_32] : memref<8x128xf32, #tpu.memory_space<vmem>>, vector<8x128xf32>
      tpu.vector_store %arg7[%c0_31, %c0_32], %68 {strides = array<i32>} : memref<8x128xf32, #tpu.memory_space<vmem>>, vector<8x128xf32>,
    } else {
    }
    %c0_26 = arith.constant 0 : index
    %c0_27 = arith.constant 0 : index
    %65 = vector.load %arg7[%c0_26, %c0_27] : memref<8x128xf32, #tpu.memory_space<vmem>>, vector<8x128xf32>
    %66 = arith.addf %65, %61 : vector<8x128xf32>
    %c0_28 = arith.constant 0 : index
    %c0_29 = arith.constant 0 : index
    %67 = vector.load %arg7[%c0_28, %c0_29] : memref<8x128xf32, #tpu.memory_space<vmem>>, vector<8x128xf32>
    tpu.vector_store %arg7[%c0_28, %c0_29], %66 {strides = array<i32>} : memref<8x128xf32, #tpu.memory_space<vmem>>, vector<8x128xf32>,
    return
  }
  func.func @transform_0(%arg0: i32, %arg1: i32) -> (i32, i32) {
    %c0_i32 = arith.constant 0 : i32
    return %arg0, %arg1 : i32, i32
  }
  func.func @transform_1(%arg0: i32, %arg1: i32) -> (i32, i32) {
    %c0_i32 = arith.constant 0 : i32
    return %arg0, %arg1 : i32, i32
  }
  func.func @transform_2(%arg0: i32, %arg1: i32) -> (i32, i32) {
    %c0_i32 = arith.constant 0 : i32
    %c0_i32_0 = arith.constant 0 : i32
    return %arg0, %c0_i32 : i32, i32
  }
  func.func @transform_3(%arg0: i32, %arg1: i32) -> (i32, i32) {
    %c0_i32 = arith.constant 0 : i32
    %c0_i32_0 = arith.constant 0 : i32
    return %arg0, %c0_i32 : i32, i32
  }
  func.func @transform_4(%arg0: i32, %arg1: i32) -> (i32, i32) {
    %c0_i32 = arith.constant 0 : i32
    return %arg0, %arg1 : i32, i32
  }
  func.func @transform_5(%arg0: i32, %arg1: i32) -> (i32, i32) {
    %c0_i32 = arith.constant 0 : i32
    %c0_i32_0 = arith.constant 0 : i32
    return %arg0, %c0_i32 : i32, i32
  }
}

</mosaic_0001>

<llo_original>
// kernel: tpu_custom_call.1
$region0: #{tpu_custom_call.1}
  #allocation0 [shape = 'u32[]', space=smem, size = 0x4, offset = 0x4, fixed_abs, tag = 'smem constant byte address 0x4 - core index']
  #allocation1 [shape = 'u32[144,128]{1,0:T(1,128)}', space=vmem, size = 0x12000, scoped, tag = 'internal scratch']
  %s0 = inlined_call_operand.hbm [shape: f32[8,256], index: 0, kind: input, shape index: {}]
  %s1 = inlined_call_operand.hbm [shape: f32[8,256], index: 1, kind: input, shape index: {}]
  %s2 = inlined_call_operand.hbm [shape: f32[8,6], index: 2, kind: input, shape index: {}]
  %s3 = inlined_call_operand.vmem [shape: f32[8,6], index: 3, kind: input, shape index: {}]
  %s4 = inlined_call_operand.hbm [shape: f32[8,256], index: 4, kind: output, shape index: {0}]
  %s5 = inlined_call_operand.hbm [shape: f32[8,128], index: 5, kind: output, shape index: {1}]
  %6 = xla_tuple %s4, %s5
  %s7 = sld [smem:[#allocation0]]
  $region50: #{tpu_custom_call.1} parent=0
    _
  %s9 = ssub.s32 1, %s7
  %s10 = scalar_select 0, %s9, %s7
  $region1: #{tpu_custom_call.1} parent=0
    #allocation2 [shape = 'u8[8192]{0}', space=vmem, size = 0x2000, scoped, tag = 'input window, operand 0, single buffered']
    #allocation3 [shape = 's32[1]{0}', space=sflag, size = 0x4, scoped, tag = 'scoped memory for tpu_custom_call.1']
    #allocation4 [shape = 's32[1]{0}', space=sflag, size = 0x4, scoped, tag = 'scoped memory for tpu_custom_call.1']
    #allocation5 [shape = 'u8[8192]{0}', space=vmem, size = 0x2000, scoped, tag = 'input window, operand 1, single buffered']
    #allocation6 [shape = 's32[1]{0}', space=sflag, size = 0x4, scoped, tag = 'scoped memory for tpu_custom_call.1']
    #allocation7 [shape = 'u8[4096]{0}', space=vmem, size = 0x1000, scoped, tag = 'input window, operand 2, single buffered']
    #allocation8 [shape = 'u8[8192]{0}', space=vmem, size = 0x2000, scoped, tag = 'output window, operand 0, single buffered']
    #allocation9 [shape = 'u8[4096]{0}', space=vmem, size = 0x1000, scoped, tag = 'output window, operand 1, single buffered']
    #allocation10 [shape = 's32[1]{0}', space=sflag, size = 0x4, scoped, tag = 'scoped memory for tpu_custom_call.1']
    %11 = vsyncpa [#allocation3], 0
    %12 = vsyncpa [#allocation6], 0
    %13 = vsyncpa [#allocation4], 0
    %14 = vsyncpa [#allocation10], 0
    // Predicated region
    $region2: #{tpu_custom_call.1} parent=1 // pred_check
      _
    $region3: #{tpu_custom_call.1} parent=1 // pred_check_branch
      %16 = sbr.rel (0) target = $region5
    $region4: #{tpu_custom_call.1} parent=1 // pred_region
      %s18 = ssub.s32 256, 256
      %19 = vsyncadd [#allocation3], %s18
      %s21 = sshll.u32 [#allocation2], 4
      %s22 = int_to_ptr.vmem [resolvable:$true] %s21
      %24 = dma.hbm_to_vmem [thread:$0]  %s0, 256, %s22, [#allocation3]
    $region5: #{tpu_custom_call.1} parent=1 // pred_fallthru
      _
    // Predicated region
    $region6: #{tpu_custom_call.1} parent=1 // pred_check
      _
    $region7: #{tpu_custom_call.1} parent=1 // pred_check_branch
      %26 = sbr.rel (0) target = $region9
    $region8: #{tpu_custom_call.1} parent=1 // pred_region
      %s28 = ssub.s32 256, 256
      %29 = vsyncadd [#allocation6], %s28
      %s31 = sshll.u32 [#allocation5], 4
      %s32 = int_to_ptr.vmem [resolvable:$true] %s31
      %34 = dma.hbm_to_vmem [thread:$0]  %s1, 256, %s32, [#allocation6]
    $region9: #{tpu_custom_call.1} parent=1 // pred_fallthru
      _
    // Predicated region
    $region10: #{tpu_custom_call.1} parent=1 // pred_check
      _
    $region11: #{tpu_custom_call.1} parent=1 // pred_check_branch
      %36 = sbr.rel (0) target = $region13
    $region12: #{tpu_custom_call.1} parent=1 // pred_region
      %s38 = ssub.s32 128, 128
      %39 = vsyncadd [#allocation6], %s38
      %s41 = sshll.u32 [#allocation7], 4
      %s42 = int_to_ptr.vmem [resolvable:$true] %s41
      %44 = dma.hbm_to_vmem [thread:$0]  %s2, 128, %s42, [#allocation6]
    $region13: #{tpu_custom_call.1} parent=1 // pred_fallthru
      _
    // Predicated region
    $region14: #{tpu_custom_call.1} parent=1 // pred_check
      _
    $region15: #{tpu_custom_call.1} parent=1 // pred_check_branch
      %46 = sbr.rel (0) target = $region17
    $region16: #{tpu_custom_call.1} parent=1 // pred_region
      _
    $region17: #{tpu_custom_call.1} parent=1 // pred_fallthru
      _
    // Predicated region
    $region18: #{tpu_custom_call.1} parent=1 // pred_check
      _
    $region19: #{tpu_custom_call.1} parent=1 // pred_check_branch
      %48 = sbr.rel (0) target = $region21
    $region20: #{tpu_custom_call.1} parent=1 // pred_region
      %49 = dma.done [#allocation3], 256
    $region21: #{tpu_custom_call.1} parent=1 // pred_fallthru
      _
    // Predicated region
    $region22: #{tpu_custom_call.1} parent=1 // pred_check
      _
    $region23: #{tpu_custom_call.1} parent=1 // pred_check_branch
      %51 = sbr.rel (0) target = $region25
    $region24: #{tpu_custom_call.1} parent=1 // pred_region
      %52 = dma.done [#allocation6], 256
    $region25: #{tpu_custom_call.1} parent=1 // pred_fallthru
      _
    // Predicated region
    $region26: #{tpu_custom_call.1} parent=1 // pred_check
      _
    $region27: #{tpu_custom_call.1} parent=1 // pred_check_branch
      %54 = sbr.rel (0) target = $region29
    $region28: #{tpu_custom_call.1} parent=1 // pred_region
      %55 = dma.done [#allocation6], 128
    $region29: #{tpu_custom_call.1} parent=1 // pred_fallthru
      _
    %v56 = vld [vmem:[#allocation2] sm:$0xff]
    %v57 = vld [vmem:[#allocation2 + $0x8] sm:$0xff]
    %v58 = vld [vmem:[#allocation5] sm:$0xff]
    %v59 = vld [vmem:[#allocation5 + $0x8] sm:$0xff]
    %v60 = vround.ne.pseudo %v56
    %v61 = vround.ne.pseudo %v57
    %62 = vst [vmem:[#allocation8] sm:$0xff] %v60
    %63 = vst [vmem:[#allocation8 + $0x8] sm:$0xff] %v61
    %v64 = vadd.f32 %v56, %v58
    %v65 = vadd.f32 %v57, %v59
    %v66 = vmul.f32 %v64, %v64
    %v67 = vmul.f32 %v65, %v65
    %v68 = vld [vmem:[#allocation7] sm:$0xff]
    %v69 = vld [vmem:[%s3] sm:$0xff]
    %71 = vset.pattern.permute.xlu0 0
    %72 = vperm.xlu0 %71, %v69
    %v73 = vpop.permute.xlu0 %72
    %v75 = vmul.f32 %v73, %v66
    %v76 = vmul.f32 %v73, %v67
    %v77 = vpow.pop %v75
    %v78 = vpow.pop %v76
    %80 = vset.pattern.permute.xlu0 0
    %81 = vperm.xlu0 %80, %v68
    %v82 = vpop.permute.xlu0 %81
    %v84 = vmul.f32 %v82, %v77
    %v85 = vmul.f32 %v82, %v78
    %v86 = vadd.f32 %v84, 0.0001
    %v87 = vadd.f32 %v85, 0.0001
    %88 = vset.pattern.permute.xlu0 1
    %89 = vperm.xlu0 %88, %v69
    %v90 = vpop.permute.xlu0 %89
    %v92 = vmul.f32 %v90, %v66
    %v93 = vmul.f32 %v90, %v67
    %v94 = vpow.pop %v92
    %v95 = vpow.pop %v93
    %96 = vset.pattern.permute.xlu0 1
    %97 = vperm.xlu0 %96, %v68
    %v98 = vpop.permute.xlu0 %97
    %v100 = vmul.f32 %v98, %v94
    %v101 = vmul.f32 %v98, %v95
    %v102 = vadd.f32 %v86, %v100
    %v103 = vadd.f32 %v87, %v101
    %104 = vset.pattern.permute.xlu0 2
    %105 = vperm.xlu0 %104, %v69
    %v106 = vpop.permute.xlu0 %105
    %v108 = vmul.f32 %v106, %v66
    %v109 = vmul.f32 %v106, %v67
    %v110 = vpow.pop %v108
    %v111 = vpow.pop %v109
    %112 = vset.pattern.permute.xlu0 2
    %113 = vperm.xlu0 %112, %v68
    %v114 = vpop.permute.xlu0 %113
    %v116 = vmul.f32 %v114, %v110
    %v117 = vmul.f32 %v114, %v111
    %v118 = vadd.f32 %v102, %v116
    %v119 = vadd.f32 %v103, %v117
    %120 = vset.pattern.permute.xlu0 3
    %121 = vperm.xlu0 %120, %v69
    %v122 = vpop.permute.xlu0 %121
    %v124 = vmul.f32 %v122, %v66
    %v125 = vmul.f32 %v122, %v67
    %v126 = vpow.pop %v124
    %v127 = vpow.pop %v125
    %128 = vset.pattern.permute.xlu0 3
    %129 = vperm.xlu0 %128, %v68
    %v130 = vpop.permute.xlu0 %129
    %v132 = vmul.f32 %v130, %v126
    %v133 = vmul.f32 %v130, %v127
    %v134 = vadd.f32 %v118, %v132
    %v135 = vadd.f32 %v119, %v133
    %136 = vset.pattern.permute.xlu0 4
    %137 = vperm.xlu0 %136, %v69
    %v138 = vpop.permute.xlu0 %137
    %v140 = vmul.f32 %v138, %v66
    %v141 = vmul.f32 %v138, %v67
    %v142 = vpow.pop %v140
    %v143 = vpow.pop %v141
    %144 = vset.pattern.permute.xlu0 4
    %145 = vperm.xlu0 %144, %v68
    %v146 = vpop.permute.xlu0 %145
    %v148 = vmul.f32 %v146, %v142
    %v149 = vmul.f32 %v146, %v143
    %v150 = vadd.f32 %v134, %v148
    %v151 = vadd.f32 %v135, %v149
    %152 = vset.pattern.permute.xlu0 5
    %153 = vperm.xlu0 %152, %v69
    %v154 = vpop.permute.xlu0 %153
    %v156 = vmul.f32 %v154, %v66
    %v157 = vmul.f32 %v154, %v67
    %v158 = vpow.pop %v156
    %v159 = vpow.pop %v157
    %160 = vset.pattern.permute.xlu0 5
    %161 = vperm.xlu0 %160, %v68
    %v162 = vpop.permute.xlu0 %161
    %v164 = vmul.f32 %v162, %v158
    %v165 = vmul.f32 %v162, %v159
    %v166 = vadd.f32 %v150, %v164
    %v167 = vadd.f32 %v151, %v165
    %v168 = vlog2.pop %v166
    %v169 = vmul.f32 %v168, 0.6931472
    %v170 = vlog2.pop %v167
    %v171 = vmul.f32 %v170, 0.6931472
    %v172 = vrcp.pop 0.6931472
    %v173 = vmul.f32 %v169, %v172
    %v174 = vmul.f32 %v171, %v172
    %v175 = vadd.f32 %v173, %v174
    %p176 = scmp.eq.s32.totalorder 0, 0
    // Predicated region
    $region30: #{tpu_custom_call.1} parent=1 // pred_check
      %p177 = pneg %p176
    $region31: #{tpu_custom_call.1} parent=1 // pred_check_branch
      %179 = sbr.rel (%p177) target = $region33
    $region32: #{tpu_custom_call.1} parent=1 // pred_region
      %180 = vst [vmem:[#allocation9] sm:$0xff] 0.0
    $region33: #{tpu_custom_call.1} parent=1 // pred_fallthru
      _
    %v181 = vld [vmem:[#allocation9] sm:$0xff]
    %v182 = vadd.f32 %v181, %v175
    %183 = vst [vmem:[#allocation9] sm:$0xff] %v182
    // Predicated region
    $region34: #{tpu_custom_call.1} parent=1 // pred_check
      _
    $region35: #{tpu_custom_call.1} parent=1 // pred_check_branch
      %185 = sbr.rel (0) target = $region37
    $region36: #{tpu_custom_call.1} parent=1 // pred_region
      %s187 = ssub.s32 256, 256
      %188 = vsyncadd [#allocation4], %s187
      %s190 = sshll.u32 [#allocation8], 4
      %s191 = int_to_ptr.vmem [resolvable:$true] %s190
      %193 = dma.vmem_to_hbm [thread:$0]  %s191, 256, %s4, [#allocation4]
    $region37: #{tpu_custom_call.1} parent=1 // pred_fallthru
      _
    // Predicated region
    $region38: #{tpu_custom_call.1} parent=1 // pred_check
      _
    $region39: #{tpu_custom_call.1} parent=1 // pred_check_branch
      %195 = sbr.rel (0) target = $region41
    $region40: #{tpu_custom_call.1} parent=1 // pred_region
      %s197 = ssub.s32 128, 128
      %198 = vsyncadd [#allocation10], %s197
      %s200 = sshll.u32 [#allocation9], 4
      %s201 = int_to_ptr.vmem [resolvable:$true] %s200
      %203 = dma.vmem_to_hbm [thread:$0]  %s201, 128, %s5, [#allocation10]
    $region41: #{tpu_custom_call.1} parent=1 // pred_fallthru
      _
    // Predicated region
    $region42: #{tpu_custom_call.1} parent=1 // pred_check
      _
    $region43: #{tpu_custom_call.1} parent=1 // pred_check_branch
      %205 = sbr.rel (0) target = $region45
    $region44: #{tpu_custom_call.1} parent=1 // pred_region
      %206 = dma.done [#allocation4], 256
    $region45: #{tpu_custom_call.1} parent=1 // pred_fallthru
      _
    // Predicated region
    $region46: #{tpu_custom_call.1} parent=1 // pred_check
      _
    $region47: #{tpu_custom_call.1} parent=1 // pred_check_branch
      %208 = sbr.rel (0) target = $region49
    $region48: #{tpu_custom_call.1} parent=1 // pred_region
      %209 = dma.done [#allocation10], 128
    $region49: #{tpu_custom_call.1} parent=1 // pred_fallthru
      _
    %210 = vsyncpa [#allocation3], 1
    %211 = vsyncpa [#allocation6], 1
    %212 = vsyncpa [#allocation4], 1
    %213 = vsyncpa [#allocation10], 1

</llo_original>
